<compile_context>
chip_gen: v7x
topology: tpu7x:2x2x1
jax: 0.10.0
libtpu: 0.0.40
codegen_flags: <defaults>
</compile_context>

<pallas_src>
import math
import functools

import jax
import jax.numpy as jnp
from jax import lax
from jax.experimental import pallas as pl
from jax.experimental.pallas import tpu as pltpu


_NEG_BIG = -1e30               # finite "-inf" so padded lanes never create NaNs
_TARGET_TILE_BYTES = 4 << 20   # ~4 MiB input slabs amortize ~0.35us/step overhead
_WIDE_BLOCK_FEAT = 32 * 1024   # feature-tile width for the wide-feature fallback
_F32_TEMPS = 3                 # conservative per-element f32 temporaries in-kernel


def _round_down(v, m):
    return (v // m) * m


@functools.lru_cache(maxsize=None)
def _tpu_config():
    """(vmem_budget_bytes, tensorcores_per_chip), generation aware."""
    capacity = None
    try:
        capacity = int(pltpu.get_tpu_info().vmem_capacity_bytes)
    except Exception:
        capacity = None
    if not capacity:
        capacity = 64 << 20            # v7x-safe assumption when query fails
    # ~75% of physical VMEM: 128 MiB -> 96 MiB (v5e/v6e), 64 MiB -> 48 MiB (v7x);
    # leaves headroom for compiler-internal scratch.
    budget = max((capacity // 4) * 3, 16 << 20)

    num_cores = 1
    try:
        kind = jax.devices()[0].device_kind.lower()
        if "v7" in kind:
            num_cores = 2              # v7x: 2 TensorCores per chip
    except Exception:
        num_cores = 1
    return budget, num_cores


def _pick_block_rows(batch, feat_block, itemsize, budget, num_cores):
    """Rows per tile: big enough to amortize the per-step pipeline overhead
    (~4 MiB input slabs), small enough that double-buffered in/out tiles plus
    f32 temporaries fit the generation-aware VMEM budget, and on multi-core
    chips leaving >= 2 grid steps per TensorCore so each core keeps
    DMA/compute overlap.  Single-core chips never split a tile just to create
    extra steps."""
    align = 16 if itemsize < 4 else 8
    if batch <= align:
        return max(1, batch)           # full second-last dim is always legal

    per_row_hbm = feat_block * itemsize
    # 2x input + 2x output double-buffers + f32 temporaries, per row.
    per_row_vmem = 4 * feat_block * itemsize + _F32_TEMPS * feat_block * 4

    rows = max(align, _TARGET_TILE_BYTES // max(per_row_hbm, 1))
    rows = min(rows, max(align, budget // max(per_row_vmem, 1)))
    rows = max(align, _round_down(rows, align))
    rows = min(rows, max(align, _round_down(batch, align)))

    if num_cores > 1:
        min_steps = 2 * num_cores
        if pl.cdiv(batch, rows) < min_steps:
            per_step = _round_down(batch // min_steps, align)
            if per_step >= align:
                rows = per_step
    return rows


# ----------------------------------------------------------------------------
# Fast path: full feature row per tile, rows tiled over the grid.
# ----------------------------------------------------------------------------
def _softmax_rows_kernel(x_ref, o_ref):
    """Numerically stable softmax along the last axis of the current tile."""
    x = x_ref[...].astype(jnp.float32)
    m = jnp.max(x, axis=-1, keepdims=True)
    e = jnp.exp(x - m)
    s = jnp.sum(e, axis=-1, keepdims=True)
    # Exact divide: the kernel is HBM-bound so the exact reciprocal is free
    # and each row sums to 1 to f32 precision.
    o_ref[...] = (e / s).astype(o_ref.dtype)


def _softmax_full_row(x, block_rows, vmem_limit):
    batch, n_feat = x.shape
    itemsize = jnp.dtype(x.dtype).itemsize
    grid = (pl.cdiv(batch, block_rows),)
    return pl.pallas_call(
        _softmax_rows_kernel,
        out_shape=jax.ShapeDtypeStruct((batch, n_feat), x.dtype),
        grid_spec=pl.GridSpec(
            grid=grid,
            in_specs=[pl.BlockSpec((block_rows, n_feat), lambda i: (i, 0))],
            out_specs=pl.BlockSpec((block_rows, n_feat), lambda i: (i, 0)),
        ),
        compiler_params=pltpu.CompilerParams(
            dimension_semantics=("parallel",),
            vmem_limit_bytes=int(vmem_limit)),
        cost_estimate=pl.CostEstimate(
            flops=5 * batch * n_feat,
            transcendentals=batch * n_feat,
            bytes_accessed=2 * batch * n_feat * itemsize),
    )(x)


# ----------------------------------------------------------------------------
# Wide-feature fallback: ONE fused pallas_call, grid = (rows, pass, feat).
#   pass 0: streaming per-row max + sum(exp) into VMEM scratch (no HBM stats).
#   pass 1: normalize exp(x - m) / l per feature tile and write the output.
# Total HBM traffic: 2 reads of x + 1 write of the output.
# ----------------------------------------------------------------------------
def _softmax_wide_kernel(x_ref, o_ref, m_ref, l_ref, *,
                         block_feat, n_feat, mask_last):
    p = pl.program_id(1)   # 0 = stats pass, 1 = normalize pass
    k = pl.program_id(2)   # feature-tile index

    @pl.when((p == 0) & (k == 0))
    def _():
        m_ref[...] = jnp.full_like(m_ref, _NEG_BIG)
        l_ref[...] = jnp.zeros_like(l_ref)

    x = x_ref[...].astype(jnp.float32)

    @pl.when(p == 0)
    def _():
        def update(xs):
            m_prev = m_ref[...]
            m_new = jnp.maximum(m_prev, jnp.max(xs, axis=-1, keepdims=True))
            l_ref[...] = (l_ref[...] * jnp.exp(m_prev - m_new)
                          + jnp.sum(jnp.exp(xs - m_new), axis=-1, keepdims=True))
            m_ref[...] = m_new

        if mask_last:
            # Only the last feature block is partial; mask its padded columns
            # so they cannot corrupt the row max / sum.  Compiled out entirely
            # when n_feat % block_feat == 0.
            last = pl.num_programs(2) - 1

            @pl.when(k != last)
            def _():
                update(x)

            @pl.when(k == last)
            def _():
                col = k * block_feat + lax.broadcasted_iota(jnp.int32, x.shape, 1)
                update(jnp.where(col < n_feat, x, _NEG_BIG))
        else:
            update(x)

    @pl.when(p == 1)
    def _():
        # Padded columns of a partial trailing block produce garbage here but
        # Pallas masks them out of the HBM store.
        o_ref[...] = (jnp.exp(x - m_ref[...]) / l_ref[...]).astype(o_ref.dtype)


def _softmax_wide(x, block_rows, block_feat, vmem_limit):
    batch, n_feat = x.shape
    itemsize = jnp.dtype(x.dtype).itemsize
    row_grid = pl.cdiv(batch, block_rows)
    feat_grid = pl.cdiv(n_feat, block_feat)
    mask_last = (n_feat % block_feat) != 0

    kernel = functools.partial(_softmax_wide_kernel, block_feat=block_feat,
                               n_feat=n_feat, mask_last=mask_last)

    return pl.pallas_call(
        kernel,
        out_shape=jax.ShapeDtypeStruct((batch, n_feat), x.dtype),
        grid_spec=pltpu.PrefetchScalarGridSpec(
            num_scalar_prefetch=0,
            grid=(row_grid, 2, feat_grid),
            in_specs=[pl.BlockSpec((block_rows, block_feat),
                                   lambda i, p, k: (i, k))],
            # Pass 0 never writes the output; pinning its block index at
            # (i, 0) during pass 0 (p * k == 0) keeps the block resident so no
            # untouched block is ever flushed -> output HBM traffic stays 1x.
            out_specs=pl.BlockSpec((block_rows, block_feat),
                                   lambda i, p, k: (i, p * k)),
            scratch_shapes=[pltpu.VMEM((block_rows, 1), jnp.float32),
                            pltpu.VMEM((block_rows, 1), jnp.float32)],
        ),
        compiler_params=pltpu.CompilerParams(
            dimension_semantics=("parallel", "arbitrary", "arbitrary"),
            vmem_limit_bytes=int(vmem_limit)),
        cost_estimate=pl.CostEstimate(
            flops=8 * batch * n_feat,
            transcendentals=2 * batch * n_feat,
            bytes_accessed=3 * batch * n_feat * itemsize),
    )(x)


# ----------------------------------------------------------------------------
# Public entry point: NB_Layer.forward(x) == softmax(x, dim=-1).
# ----------------------------------------------------------------------------
def _softmax_last_axis_2d(x, block_rows, block_feat):
    batch, n_feat = x.shape
    itemsize = jnp.dtype(x.dtype).itemsize
    budget, num_cores = _tpu_config()

    # Normalize a user-supplied feature tile: must be a multiple of 128 to
    # satisfy the (8,128) BlockSpec rule when it does not cover n_feat.
    if block_feat is not None:
        block_feat = max(128, _round_down(int(block_feat), 128))
        if block_feat >= n_feat:
            block_feat = None

    if block_feat is None:
        # Wide (2-read) fallback only when even a minimal 8-row slab of the
        # full feature axis cannot fit the generation-aware VMEM budget.
        min_rows_bytes = 8 * n_feat * (4 * itemsize + _F32_TEMPS * 4)
        if min_rows_bytes > budget:
            block_feat = min(_WIDE_BLOCK_FEAT, _round_down(n_feat, 128))
            block_feat = max(128, block_feat)

    # Normalize a user-supplied row tile.
    if block_rows is not None:
        block_rows = max(1, min(int(block_rows), batch))
        if block_rows < batch:
            block_rows = min(max(8, _round_down(block_rows, 8)), batch)

    if block_feat is not None and block_feat < n_feat:
        if block_rows is None:
            block_rows = _pick_block_rows(batch, block_feat, itemsize,
                                          budget, num_cores)
        return _softmax_wide(x, block_rows, block_feat, budget)

    if block_rows is None:
        block_rows = _pick_block_rows(batch, n_feat, itemsize, budget, num_cores)
    return _softmax_full_row(x, block_rows, budget)


@functools.partial(jax.jit, static_argnames=("block_rows", "block_feat"))
def nb_layer_forward(x, block_rows=None, block_feat=None):
    """softmax(x, axis=-1) (the NB_Layer forward pass), on TPU via Pallas."""
    orig_shape = x.shape
    x2d = x.reshape(1, -1) if x.ndim == 1 else x.reshape(-1, x.shape[-1])
    out = _softmax_last_axis_2d(x2d, block_rows, block_feat)
    return out.reshape(orig_shape)


class NBLayerPallas:
    """Minimal JAX port of NB_Layer (forward path runs in the Pallas kernel)."""

    def __init__(self, out_features, r_init=2, scaling_type="sum"):
        # Deterministic parameter init, exactly as the PyTorch __init__ does.
        self.log_r = jnp.full((1, out_features), math.log(r_init - 1),
                              dtype=jnp.float32)
        self._scaling_type = scaling_type
        if self._scaling_type == "sum":
            self._activation = "softmax"

    @property
    def dispersion(self):
        return jnp.exp(self.log_r) + 1.0

    def forward(self, x):
        return nb_layer_forward(x)

    @staticmethod
    def rescale(scaling_factor, model_output):
        return scaling_factor * model_output

    # TODO(synk): logNBdensity needs lgamma, which has no Mosaic lowering, so
    # the NB log-density / loss stay in plain JAX (XLA handles them fine).
    def log_prob(self, model_output, target, scaling_factor):
        eps = 1e-10
        r = self.dispersion
        m = self.rescale(scaling_factor, model_output)
        k = target
        x = lax.lgamma(k + r) - lax.lgamma(r) - lax.lgamma(k + 1.0)
        inverse_rme = 1.0 / (r + m + eps)
        x = x + k * jnp.log(m * inverse_rme + eps)
        x = x + r * jnp.log(r * inverse_rme)
        return x

    def loss(self, model_output, target, scaling_factor):
        return -self.log_prob(model_output, target, scaling_factor)


if __name__ == "__main__":
    key = jax.random.PRNGKey(0)
    k1, k2, k3, k4, k5 = jax.random.split(key, 5)

    # --- fast path: batch not a multiple of the row tile (partial row block) ---
    batch, out_features = 10, 256
    x = jax.random.normal(k1, (batch, out_features), dtype=jnp.float32)
    layer = NBLayerPallas(out_features, r_init=2, scaling_type="sum")
    out = jax.block_until_ready(layer.forward(x))
    ref = jax.nn.softmax(x, axis=-1)
    assert out.shape == (batch, out_features)
    assert jnp.allclose(out, ref, atol=1e-5, rtol=1e-5)
    assert jnp.allclose(jnp.sum(out, axis=-1), jnp.ones((batch,)), atol=1e-3)

    # --- larger fast-path shape (n_feat-aware row tiling) ---
    x2 = jax.random.normal(k2, (64, 2048), dtype=jnp.float32)
    out2 = jax.block_until_ready(nb_layer_forward(x2))
    assert jnp.allclose(out2, jax.nn.softmax(x2, axis=-1), atol=1e-5, rtol=1e-5)
    assert jnp.allclose(jnp.sum(out2, axis=-1), jnp.ones((64,)), atol=1e-3)

    # --- bf16 fast path (dtype-aware tiling) ---
    x3 = jax.random.normal(k3, (32, 1024), dtype=jnp.float32).astype(jnp.bfloat16)
    out3 = jax.block_until_ready(nb_layer_forward(x3))
    ref3 = jax.nn.softmax(x3.astype(jnp.float32), axis=-1)
    assert out3.dtype == jnp.bfloat16
    assert jnp.allclose(out3.astype(jnp.float32), ref3, atol=1e-3, rtol=1e-2)

    # --- fused wide-feature fallback, forced small feature tile; n_feat=500
    #     gives a partial trailing feature block (exercises the column mask) ---
    x4 = jax.random.normal(k4, (12, 500), dtype=jnp.float32)
    out4 = jax.block_until_ready(nb_layer_forward(x4, block_feat=128))
    assert jnp.allclose(out4, jax.nn.softmax(x4, axis=-1), atol=1e-5, rtol=1e-5)
    assert jnp.allclose(jnp.sum(out4, axis=-1), jnp.ones((12,)), atol=1e-3)

    # --- fused wide path with an exactly divisible feature axis
    #     (mask compiled out entirely) ---
    x5 = jax.random.normal(k5, (12, 512), dtype=jnp.float32)
    out5 = jax.block_until_ready(nb_layer_forward(x5, block_feat=128))
    assert jnp.allclose(out5, jax.nn.softmax(x5, axis=-1), atol=1e-5, rtol=1e-5)
    assert jnp.allclose(jnp.sum(out5, axis=-1), jnp.ones((12,)), atol=1e-3)

    print("KERNEL_OK")
</pallas_src>

<mosaic_0001>
module attributes {stable_mosaic.version = 11 : i64} {
  func.func @_softmax_rows_kernel(%arg0: i32, %arg1: memref<8x256xf32, #tpu.memory_space<vmem>>, %arg2: memref<8x256xf32, #tpu.memory_space<vmem>>) attributes {dimension_semantics = [#tpu.dimension_semantics<parallel>], iteration_bounds = array<i64: 2>, scalar_prefetch = 0 : i64, scratch_operands = 0 : i64, tpu.core_type = #tpu.core_type<tc>, window_params = [{transform_indices = @transform_0, window_bounds = array<i64: 8, 256>}, {transform_indices = @transform_1, window_bounds = array<i64: 8, 256>}]} {
    %c0 = arith.constant 0 : index
    %c0_0 = arith.constant 0 : index
    %0 = vector.load %arg1[%c0, %c0_0] : memref<8x256xf32, #tpu.memory_space<vmem>>, vector<8x256xf32>
    %cst = arith.constant dense<0xFF800000> : vector<8xf32>
    %1 = vector.multi_reduction <maximumf>, %0, %cst [1] : vector<8x256xf32> to vector<8xf32>
    %2 = vector.shape_cast %1 : vector<8xf32> to vector<8x1xf32>
    %3 = vector.broadcast %2 : vector<8x1xf32> to vector<8x256xf32>
    %4 = arith.subf %0, %3 : vector<8x256xf32>
    %5 = math.exp %4 : vector<8x256xf32>
    %cst_1 = arith.constant dense<0.000000e+00> : vector<8xf32>
    %6 = vector.multi_reduction <add>, %5, %cst_1 [1] : vector<8x256xf32> to vector<8xf32>
    %7 = vector.shape_cast %6 : vector<8xf32> to vector<8x1xf32>
    %8 = vector.broadcast %7 : vector<8x1xf32> to vector<8x256xf32>
    %9 = arith.divf %5, %8 : vector<8x256xf32>
    %c0_2 = arith.constant 0 : index
    %c0_3 = arith.constant 0 : index
    %10 = vector.load %arg2[%c0_2, %c0_3] : memref<8x256xf32, #tpu.memory_space<vmem>>, vector<8x256xf32>
    tpu.vector_store %arg2[%c0_2, %c0_3], %9 {strides = array<i32>} : memref<8x256xf32, #tpu.memory_space<vmem>>, vector<8x256xf32>,
    return
  }
  func.func @transform_0(%arg0: i32) -> (i32, i32) {
    %c0_i32 = arith.constant 0 : i32
    %c0_i32_0 = arith.constant 0 : i32
    return %arg0, %c0_i32 : i32, i32
  }
  func.func @transform_1(%arg0: i32) -> (i32, i32) {
    %c0_i32 = arith.constant 0 : i32
    %c0_i32_0 = arith.constant 0 : i32
    return %arg0, %c0_i32 : i32, i32
  }
}

</mosaic_0001>

<llo_original>
// kernel: nb_layer_forward.1
$region0: #{nb_layer_forward.1}
  #allocation0 [shape = 'u32[]', space=smem, size = 0x4, offset = 0x4, fixed_abs, tag = 'smem constant byte address 0x4 - core index']
  #allocation1 [shape = 'u32[144,128]{1,0:T(1,128)}', space=vmem, size = 0x12000, scoped, tag = 'internal scratch']
  %s0 = inlined_call_operand.hbm [shape: f32[10,256], index: 0, kind: input, shape index: {}]
  %s1 = inlined_call_operand.hbm [shape: f32[10,256], index: 1, kind: output, shape index: {}]
  %s2 = sld [smem:[#allocation0]]
  $region41: #{nb_layer_forward.1} parent=0
    _
  %s4 = ssub.s32 1, %s2
  %s5 = scalar_select 0, %s4, %s2
  $region1: #{nb_layer_forward.1} parent=0
    #allocation2 [shape = 'u8[16384]{0}', space=vmem, size = 0x4000, scoped, tag = 'input window, operand 0']
    #allocation3 [shape = 's32[2]{0}', space=sflag, size = 0x8, scoped, tag = 'scoped memory for nb_layer_forward.1']
    #allocation4 [shape = 's32[2]{0}', space=sflag, size = 0x8, scoped, tag = 'scoped memory for nb_layer_forward.1']
    #allocation5 [shape = 'u8[16384]{0}', space=vmem, size = 0x4000, scoped, tag = 'output window, operand 0']
    %6 = vsyncpa [#allocation3], 0
    %s7 = scalar_lea.sflag [#allocation3], 1
    %8 = vsyncpa %s7, 0
    %9 = vsyncpa [#allocation4], 0
    %s10 = scalar_lea.sflag [#allocation4], 1
    %11 = vsyncpa %s10, 0
    loop: start=0, step=1, limit=4
    $region2: #{nb_layer_forward.1} parent=1 // loop_pre_header
      _
    $region3: #{nb_layer_forward.1} parent=1 // loop_header
      %s13 = sphi 0, %s17
      %p14 = scmp.ge.s32.totalorder %s13, 4
      %s23 = sphi 0, %s25
      %s26 = sphi 0, %s23
      %s27 = sphi 0, %s26
      %s43 = sphi 0, %s27
      %s49 = sphi 0, %s51
      %s52 = sphi 0, %s49
      %s53 = sphi 0, %s52
      %s69 = sphi 0, %s53
    $region4: #{nb_layer_forward.1} parent=1 // loop_header_branch
      %16 = sbr.rel (%p14) target = $region8
    $region5: #{nb_layer_forward.1} parent=1 // loop_body
      %s18 = ssub.s32 %s13, 1
      %s19 = ssub.s32 %s13, 2
      %s20 = sadd.s32 %s13, 1
      %s21 = ssub.s32 %s13, %s20
      %p22 = scmp.eq.s32.totalorder %s21, 0
      %s24 = sadd.s32 %s23, 1
      %s25 = scalar_select %p22, %s23, %s24
      %p28 = pneg %p22
      %p29 = scmp.eq.s32.totalorder %s13, 1
      %p30 = por %p28, %p29
      %p31 = scmp.ne.s32.totalorder %s23, %s26
      %p32 = scmp.eq.s32.totalorder %s13, 0
      %p33 = por %p31, %p32
      %p34 = scmp.ne.s32.totalorder %s23, %s26
      %p35 = scmp.eq.s32.totalorder %s18, 1
      %p36 = por %p34, %p35
      %p37 = scmp.ne.s32.totalorder %s26, %s27
      %p38 = scmp.eq.s32.totalorder %s18, 0
      %p39 = por %p37, %p38
      %p40 = scmp.ne.s32.totalorder %s26, %s27
      %p41 = scmp.eq.s32.totalorder %s19, 1
      %p42 = por %p40, %p41
      %p44 = scmp.ne.s32.totalorder %s27, %s43
      %p45 = scmp.eq.s32.totalorder %s19, 0
      %p46 = por %p44, %p45
      %s47 = ssub.s32 %s13, %s20
      %p48 = scmp.eq.s32.totalorder %s47, 0
      %s50 = sadd.s32 %s49, 1
      %s51 = scalar_select %p48, %s49, %s50
      %p54 = pneg %p48
      %p55 = scmp.eq.s32.totalorder %s13, 1
      %p56 = por %p54, %p55
      %p57 = scmp.ne.s32.totalorder %s49, %s52
      %p58 = scmp.eq.s32.totalorder %s13, 0
      %p59 = por %p57, %p58
      %p60 = scmp.ne.s32.totalorder %s49, %s52
      %p61 = scmp.eq.s32.totalorder %s18, 1
      %p62 = por %p60, %p61
      %p63 = scmp.ne.s32.totalorder %s52, %s53
      %p64 = scmp.eq.s32.totalorder %s18, 0
      %p65 = por %p63, %p64
      %p66 = scmp.ne.s32.totalorder %s52, %s53
      %p67 = scmp.eq.s32.totalorder %s19, 1
      %p68 = por %p66, %p67
      %p70 = scmp.ne.s32.totalorder %s53, %s69
      %p71 = scmp.eq.s32.totalorder %s19, 0
      %p72 = por %p70, %p71
      %p73 = scmp.le.s32.totalorder 1, %s13
      %p74 = scmp.lt.s32.totalorder %s13, 3
      %p75 = pnand %p73, %p74
      %p76 = pneg %p75
      // Predicated region
      $region9: #{nb_layer_forward.1} parent=5 // pred_check
        _
      $region10: #{nb_layer_forward.1} parent=5 // pred_check_branch
        %78 = sbr.rel (%p75) target = $region12
      $region11: #{nb_layer_forward.1} parent=5 // pred_region
        %s79 = ssub.s32 %s13, 1
      $region12: #{nb_layer_forward.1} parent=5 // pred_fallthru
        _
      %p80 = scmp.lt.s32.totalorder %s13, 2
      // Predicated region
      $region13: #{nb_layer_forward.1} parent=5 // pred_check
        %p81 = pneg %p80
      $region14: #{nb_layer_forward.1} parent=5 // pred_check_branch
        %83 = sbr.rel (%p81) target = $region16
      $region15: #{nb_layer_forward.1} parent=5 // pred_region
        // Predicated region
        $region17: #{nb_layer_forward.1} parent=15 // pred_check
          %p84 = pneg %p33
        $region18: #{nb_layer_forward.1} parent=15 // pred_check_branch
          %86 = sbr.rel (%p84) target = $region20
        $region19: #{nb_layer_forward.1} parent=15 // pred_region
          %s87 = sand.u32 %s23, 1
          %s88 = scalar_lea.sflag [#allocation3], %s87
          %s89 = sand.u32 %s23, 1
          %s90 = smul.addr %s89, 16
          %s91 = scalar_lea.vmem [#allocation2], %s90
          %s93 = ssub.s32 256, 256
          %94 = vsyncadd %s88, %s93
          %s95 = smul.addr %s13, 2
          %s96 = smul.addr %s95, 128
          %s97 = scalar_lea.hbm %s0, %s96
          %s99 = sshll.u32 %s91, 4
          %s100 = int_to_ptr.vmem [resolvable:$true] %s99
          %102 = dma.hbm_to_vmem [thread:$0]  %s97, 256, %s100, %s88
        $region20: #{nb_layer_forward.1} parent=15 // pred_fallthru
          _
      $region16: #{nb_layer_forward.1} parent=5 // pred_fallthru
        _
      %p103 = scmp.le.s32.totalorder 1, %s13
      %p104 = scmp.lt.s32.totalorder %s13, 3
      %p105 = pnand %p103, %p104
      %p106 = pneg %p105
      // Predicated region
      $region21: #{nb_layer_forward.1} parent=5 // pred_check
        _
      $region22: #{nb_layer_forward.1} parent=5 // pred_check_branch
        %108 = sbr.rel (%p105) target = $region24
      $region23: #{nb_layer_forward.1} parent=5 // pred_region
        %s109 = ssub.s32 %s13, 1
        %s110 = sand.u32 %s26, 1
        %s111 = scalar_lea.sflag [#allocation3], %s110
        %s112 = sand.u32 %s26, 1
        %s113 = smul.addr %s112, 16
        %s114 = scalar_lea.vmem [#allocation2], %s113
        // Predicated region
        $region25: #{nb_layer_forward.1} parent=23 // pred_check
          %p115 = pneg %p39
        $region26: #{nb_layer_forward.1} parent=23 // pred_check_branch
          %117 = sbr.rel (%p115) target = $region28
        $region27: #{nb_layer_forward.1} parent=23 // pred_region
          %118 = dma.done %s111, 256
        $region28: #{nb_layer_forward.1} parent=23 // pred_fallthru
          _
        %s119 = sand.u32 %s26, 1
        %s120 = scalar_lea.sflag [#allocation3], %s119
        %s121 = sand.u32 %s26, 1
        %s122 = smul.addr %s121, 16
        %s123 = scalar_lea.vmem [#allocation2], %s122
        %p124 = pneg %p39
        %p125 = pneg %p36
        %p126 = pneg %p65
        %p127 = pneg %p62
        %s128 = sand.u32 %s52, 1
        %s129 = scalar_lea.sflag [#allocation4], %s128
        %s130 = sand.u32 %s52, 1
        %s131 = smul.addr %s130, 16
        %s132 = scalar_lea.vmem [#allocation5], %s131
        %v133 = vld [vmem:[%s114] sm:$0xff]
        %v134 = vld [vmem:[%s114 + $0x8] sm:$0xff]
        %v135 = vmax.f32 %v133, %v134
        %136 = vmax.xlane.f32.xlu0 %v135
        %v137 = vpop.xlane.xlu0 %136
        %v138 = vsub.f32 %v133, %v137
        %v139 = vsub.f32 %v134, %v137
        %v140 = vmul.f32 %v138, 1.442695
        %v141 = vpow.pop %v140
        %v142 = vmul.f32 %v139, 1.442695
        %v143 = vpow.pop %v142
        %v144 = vadd.f32 %v141, %v143
        %145 = vadd.xlane.f32.xlu0 %v144
        %v146 = vpop.xlane.xlu0 %145
        %v147 = vrcp.pop %v146
        %v148 = vmul.f32 %v141, %v147
        %v149 = vmul.f32 %v143, %v147
        %150 = vst [vmem:[%s132] sm:$0xff] %v148
        %151 = vst [vmem:[%s132 + $0x8] sm:$0xff] %v149
        %s152 = sand.u32 %s52, 1
        %s153 = scalar_lea.sflag [#allocation4], %s152
        %s154 = sand.u32 %s52, 1
        %s155 = smul.addr %s154, 16
        %s156 = scalar_lea.vmem [#allocation5], %s155
        // Predicated region
        $region29: #{nb_layer_forward.1} parent=23 // pred_check
          %p157 = pneg %p62
        $region30: #{nb_layer_forward.1} parent=23 // pred_check_branch
          %159 = sbr.rel (%p157) target = $region32
        $region31: #{nb_layer_forward.1} parent=23 // pred_region
          %s161 = ssub.s32 256, 256
          %162 = vsyncadd %s153, %s161
          %s163 = smul.addr %s18, 2
          %s164 = smul.addr %s163, 128
          %s165 = scalar_lea.hbm %s1, %s164
          %s167 = sshll.u32 %s156, 4
          %s168 = int_to_ptr.vmem [resolvable:$true] %s167
          %170 = dma.vmem_to_hbm [thread:$0]  %s168, 256, %s165, %s153
        $region32: #{nb_layer_forward.1} parent=23 // pred_fallthru
          _
      $region24: #{nb_layer_forward.1} parent=5 // pred_fallthru
        _
      %p171 = scmp.le.s32.totalorder 2, %s13
      // Predicated region
      $region33: #{nb_layer_forward.1} parent=5 // pred_check
        %p172 = pneg %p171
      $region34: #{nb_layer_forward.1} parent=5 // pred_check_branch
        %174 = sbr.rel (%p172) target = $region36
      $region35: #{nb_layer_forward.1} parent=5 // pred_region
        %s175 = ssub.s32 %s13, 2
        // Predicated region
        $region37: #{nb_layer_forward.1} parent=35 // pred_check
          %p176 = pneg %p68
        $region38: #{nb_layer_forward.1} parent=35 // pred_check_branch
          %178 = sbr.rel (%p176) target = $region40
        $region39: #{nb_layer_forward.1} parent=35 // pred_region
          %s179 = sand.u32 %s53, 1
          %s180 = scalar_lea.sflag [#allocation4], %s179
          %s181 = sand.u32 %s53, 1
          %s182 = smul.addr %s181, 16
          %s183 = scalar_lea.vmem [#allocation5], %s182
          %184 = dma.done %s180, 256
        $region40: #{nb_layer_forward.1} parent=35 // pred_fallthru
          _
      $region36: #{nb_layer_forward.1} parent=5 // pred_fallthru
        _
    $region6: #{nb_layer_forward.1} parent=1 // loop_footer
      %s17 = sadd.s32 1, %s13
    $region7: #{nb_layer_forward.1} parent=1 // loop_footer_branch
      %12 = sbr.rel target = $region3
    $region8: #{nb_layer_forward.1} parent=1 // loop_exit
      _
    %185 = vsyncpa [#allocation3], 1
    %s186 = scalar_lea.sflag [#allocation3], 1
    %187 = vsyncpa %s186, 1
    %188 = vsyncpa [#allocation4], 1
    %s189 = scalar_lea.sflag [#allocation4], 1
    %190 = vsyncpa %s189, 1

</llo_original>
